<compile_context>
chip_gen: v7x
topology: tpu7x:2x2x1
jax: 0.10.0
libtpu: 0.0.40
codegen_flags: <defaults>
</compile_context>

<pallas_src>
import functools

import jax
import jax.numpy as jnp
from jax.experimental import pallas as pl
from jax.experimental.pallas import tpu as pltpu


def _round_up(x, m):
    return ((x + m - 1) // m) * m


def _gce_mask_kernel(logits_ref, label_ref, mask_ref, out_ref,
                     lm_acc, m_acc, pos_acc, neg_acc, *, q):
    t = pl.program_id(1)

    @pl.when(t == 0)
    def _():
        lm_acc[...] = jnp.zeros_like(lm_acc)
        m_acc[...] = jnp.zeros_like(m_acc)
        pos_acc[...] = jnp.zeros_like(pos_acc)
        neg_acc[...] = jnp.zeros_like(neg_acc)

    # Inputs may arrive as bf16 / int8 (caller's choice to save HBM bandwidth);
    # accumulate in f32.
    logits = logits_ref[...].astype(jnp.float32)   # (TB, TT)
    label = label_ref[...].astype(jnp.float32)     # (TB, TT)
    mask = mask_ref[...].astype(jnp.float32)       # (TB, TT)

    eps = jnp.float32(1e-07)
    qf = jnp.float32(q)

    # CSE the mask products: lm = label*mask, nm = (1-label)*mask = mask - lm.
    lm = label * mask
    nm = mask - lm

    # x ** q computed as exp(q * log(x)); arguments are strictly positive
    # because logits are probabilities in [0, 1] and we add 1e-7 (same
    # assumption as the reference).  The 1/q factor is applied once to the
    # per-row partials in the finalize step, not per element.
    pos_pow = jnp.exp(qf * jnp.log(logits + eps))
    neg_pow = jnp.exp(qf * jnp.log(1.0 - logits + eps))

    lm_acc[...] += jnp.sum(lm, axis=1, keepdims=True)                     # Σ label*mask
    m_acc[...] += jnp.sum(mask, axis=1, keepdims=True)                    # Σ mask
    pos_acc[...] += jnp.sum((1.0 - pos_pow) * lm, axis=1, keepdims=True)  # Σ (1-(p+e)^q)*l*m
    neg_acc[...] += jnp.sum((1.0 - neg_pow) * nm, axis=1, keepdims=True)  # Σ (1-(1-p+e)^q)*(1-l)*m

    @pl.when(t == pl.num_programs(1) - 1)
    def _():
        inv_q = jnp.float32(1.0 / q)                     # compile-time constant
        pos_factor = lm_acc[...] + eps
        neg_factor = (m_acc[...] - lm_acc[...]) + eps    # Σ (1-label)*mask + eps
        rows = inv_q * (pos_acc[...] / pos_factor + neg_acc[...] / neg_factor)
        out_ref[...] = rows                              # (TB, 1) per-row loss


def generalized_ce_mask(logits, label, mask, q, *, tb=256, tt=1024):
    """Pallas implementation of GeneralizedCE_Mask.forward. Returns a scalar.

    tb/tt are the (batch, class) tile sizes.  Defaults (256, 1024) give
    3 inputs x 2 pipeline buffers x 1 MiB = 6 MiB of VMEM, safe on
    v5e/v6e (128 MiB) and v7x (64 MiB physical / 32 MiB default scoped).
    """
    B, T = logits.shape
    assert label.shape == (B, T)
    assert mask.shape == (B, T)

    # Pad to lane/sublane-friendly multiples, then to whole tiles.  Padded
    # elements get mask = 0 (and label = 0, logits = 0.5), so they contribute
    # exactly 0 to every partial sum; padded rows produce 0 and the mean in
    # the wrapper divides by the *original* B.
    b_pad = _round_up(B, 8)
    t_pad = _round_up(T, 128)
    tb = min(tb, b_pad)
    tt = min(tt, t_pad)
    b_pad = _round_up(b_pad, tb)
    t_pad = _round_up(t_pad, tt)

    def pad(x, val):
        return jnp.pad(x, ((0, b_pad - B), (0, t_pad - T)), constant_values=val)

    logits_p = pad(logits, 0.5)   # any value in (0,1): keeps log() finite, masked out
    label_p = pad(label, 0.0)
    mask_p = pad(mask, 0.0)

    grid = (b_pad // tb, t_pad // tt)

    rows = pl.pallas_call(
        functools.partial(_gce_mask_kernel, q=q),
        out_shape=jax.ShapeDtypeStruct((b_pad, 1), jnp.float32),
        grid_spec=pltpu.PrefetchScalarGridSpec(
            num_scalar_prefetch=0,
            grid=grid,
            in_specs=[
                pl.BlockSpec((tb, tt), lambda b, t: (b, t)),
                pl.BlockSpec((tb, tt), lambda b, t: (b, t)),
                pl.BlockSpec((tb, tt), lambda b, t: (b, t)),
            ],
            out_specs=pl.BlockSpec((tb, 1), lambda b, t: (b, 0)),
            scratch_shapes=[
                pltpu.VMEM((tb, 1), jnp.float32),   # Σ label*mask
                pltpu.VMEM((tb, 1), jnp.float32),   # Σ mask
                pltpu.VMEM((tb, 1), jnp.float32),   # Σ (1-pos_pow)*lm
                pltpu.VMEM((tb, 1), jnp.float32),   # Σ (1-neg_pow)*(mask-lm)
            ],
        ),
        compiler_params=pltpu.CompilerParams(
            dimension_semantics=("parallel", "arbitrary")),
    )(logits_p, label_p, mask_p)

    # Padded rows are exactly 0, so summing the padded output is safe; divide
    # by the original batch size to get the mean.
    return jnp.sum(rows) / jnp.float32(B)


def _reference(logits, label, mask, q):
    eps = 1e-07
    pos_factor = jnp.sum(label * mask, axis=1) + eps
    neg_factor = jnp.sum((1 - label) * mask, axis=1) + eps
    first = jnp.mean(
        jnp.sum((1 - (logits + eps) ** q) / q * label * mask, axis=1) / pos_factor)
    second = jnp.mean(
        jnp.sum((1 - (1 - logits + eps) ** q) / q * (1 - label) * mask, axis=1)
        / neg_factor)
    return first + second


if __name__ == "__main__":
    q = 0.7
    B, T = 2, 16

    key = jax.random.PRNGKey(0)
    k1, k2, k3 = jax.random.split(key, 3)

    # logits are probabilities in (0, 1); label and mask are {0, 1}.
    logits = jax.nn.sigmoid(jax.random.normal(k1, (B, T), dtype=jnp.float32))
    label = (jax.random.uniform(k2, (B, T)) > 0.5).astype(jnp.float32)
    mask = (jax.random.uniform(k3, (B, T)) > 0.3).astype(jnp.float32)

    loss = generalized_ce_mask(logits, label, mask, q)
    loss = jax.block_until_ready(loss)

    ref = _reference(logits, label, mask, q)
    assert jnp.allclose(loss, ref, atol=1e-5, rtol=1e-5), (loss, ref)

    print("KERNEL_OK")
</pallas_src>

<mosaic_0001>
module attributes {stable_mosaic.version = 11 : i64} {
  func.func @_gce_mask_kernel(%arg0: i32, %arg1: i32, %arg2: memref<8x128xf32, #tpu.memory_space<vmem>>, %arg3: memref<8x128xf32, #tpu.memory_space<vmem>>, %arg4: memref<8x128xf32, #tpu.memory_space<vmem>>, %arg5: memref<8x1xf32, #tpu.memory_space<vmem>>, %arg6: memref<8x1xf32, #tpu.memory_space<vmem>>, %arg7: memref<8x1xf32, #tpu.memory_space<vmem>>, %arg8: memref<8x1xf32, #tpu.memory_space<vmem>>, %arg9: memref<8x1xf32, #tpu.memory_space<vmem>>) attributes {dimension_semantics = [#tpu.dimension_semantics<parallel>, #tpu.dimension_semantics<arbitrary>], iteration_bounds = array<i64: 1, 1>, scalar_prefetch = 0 : i64, scratch_operands = 4 : i64, tpu.core_type = #tpu.core_type<tc>, window_params = [{transform_indices = @transform_0, window_bounds = array<i64: 8, 128>}, {transform_indices = @transform_1, window_bounds = array<i64: 8, 128>}, {transform_indices = @transform_2, window_bounds = array<i64: 8, 128>}, {transform_indices = @transform_3, window_bounds = array<i64: 8, 1>}]} {
    %c0_i32 = arith.constant 0 : i32
    %0 = arith.cmpi eq, %arg1, %c0_i32 : i32
    %1 = arith.extui %0 : i1 to i32
    %c0_i32_0 = arith.constant 0 : i32
    %2 = arith.cmpi ne, %1, %c0_i32_0 : i32
    scf.if %2 {
      %cst_35 = arith.constant 0.000000e+00 : f32
      %51 = vector.broadcast %cst_35 : f32 to vector<8x1xf32>
      %c0_36 = arith.constant 0 : index
      %c0_37 = arith.constant 0 : index
      %52 = vector.load %arg6[%c0_36, %c0_37] : memref<8x1xf32, #tpu.memory_space<vmem>>, vector<8x1xf32>
      tpu.vector_store %arg6[%c0_36, %c0_37], %51 {strides = array<i32>} : memref<8x1xf32, #tpu.memory_space<vmem>>, vector<8x1xf32>,
      %cst_38 = arith.constant 0.000000e+00 : f32
      %53 = vector.broadcast %cst_38 : f32 to vector<8x1xf32>
      %c0_39 = arith.constant 0 : index
      %c0_40 = arith.constant 0 : index
      %54 = vector.load %arg7[%c0_39, %c0_40] : memref<8x1xf32, #tpu.memory_space<vmem>>, vector<8x1xf32>
      tpu.vector_store %arg7[%c0_39, %c0_40], %53 {strides = array<i32>} : memref<8x1xf32, #tpu.memory_space<vmem>>, vector<8x1xf32>,
      %cst_41 = arith.constant 0.000000e+00 : f32
      %55 = vector.broadcast %cst_41 : f32 to vector<8x1xf32>
      %c0_42 = arith.constant 0 : index
      %c0_43 = arith.constant 0 : index
      %56 = vector.load %arg8[%c0_42, %c0_43] : memref<8x1xf32, #tpu.memory_space<vmem>>, vector<8x1xf32>
      tpu.vector_store %arg8[%c0_42, %c0_43], %55 {strides = array<i32>} : memref<8x1xf32, #tpu.memory_space<vmem>>, vector<8x1xf32>,
      %cst_44 = arith.constant 0.000000e+00 : f32
      %57 = vector.broadcast %cst_44 : f32 to vector<8x1xf32>
      %c0_45 = arith.constant 0 : index
      %c0_46 = arith.constant 0 : index
      %58 = vector.load %arg9[%c0_45, %c0_46] : memref<8x1xf32, #tpu.memory_space<vmem>>, vector<8x1xf32>
      tpu.vector_store %arg9[%c0_45, %c0_46], %57 {strides = array<i32>} : memref<8x1xf32, #tpu.memory_space<vmem>>, vector<8x1xf32>,
    } else {
    }
    %c0 = arith.constant 0 : index
    %c0_1 = arith.constant 0 : index
    %3 = vector.load %arg2[%c0, %c0_1] : memref<8x128xf32, #tpu.memory_space<vmem>>, vector<8x128xf32>
    %c0_2 = arith.constant 0 : index
    %c0_3 = arith.constant 0 : index
    %4 = vector.load %arg3[%c0_2, %c0_3] : memref<8x128xf32, #tpu.memory_space<vmem>>, vector<8x128xf32>
    %c0_4 = arith.constant 0 : index
    %c0_5 = arith.constant 0 : index
    %5 = vector.load %arg4[%c0_4, %c0_5] : memref<8x128xf32, #tpu.memory_space<vmem>>, vector<8x128xf32>
    %6 = arith.mulf %4, %5 : vector<8x128xf32>
    %7 = arith.subf %5, %6 : vector<8x128xf32>
    %cst = arith.constant 1.000000e-07 : f32
    %8 = vector.broadcast %cst : f32 to vector<8x128xf32>
    %9 = arith.addf %3, %8 : vector<8x128xf32>
    %10 = math.log %9 : vector<8x128xf32>
    %cst_6 = arith.constant 0.699999988 : f32
    %11 = vector.broadcast %cst_6 : f32 to vector<8x128xf32>
    %12 = arith.mulf %11, %10 : vector<8x128xf32>
    %13 = math.exp %12 : vector<8x128xf32>
    %cst_7 = arith.constant 1.000000e+00 : f32
    %14 = vector.broadcast %cst_7 : f32 to vector<8x128xf32>
    %15 = arith.subf %14, %3 : vector<8x128xf32>
    %cst_8 = arith.constant 1.000000e-07 : f32
    %16 = vector.broadcast %cst_8 : f32 to vector<8x128xf32>
    %17 = arith.addf %15, %16 : vector<8x128xf32>
    %18 = math.log %17 : vector<8x128xf32>
    %cst_9 = arith.constant 0.699999988 : f32
    %19 = vector.broadcast %cst_9 : f32 to vector<8x128xf32>
    %20 = arith.mulf %19, %18 : vector<8x128xf32>
    %21 = math.exp %20 : vector<8x128xf32>
    %c0_10 = arith.constant 0 : index
    %c0_11 = arith.constant 0 : index
    %22 = vector.load %arg6[%c0_10, %c0_11] : memref<8x1xf32, #tpu.memory_space<vmem>>, vector<8x1xf32>
    %cst_12 = arith.constant dense<0.000000e+00> : vector<8xf32>
    %23 = vector.multi_reduction <add>, %6, %cst_12 [1] : vector<8x128xf32> to vector<8xf32>
    %24 = vector.shape_cast %23 : vector<8xf32> to vector<8x1xf32>
    %25 = arith.addf %22, %24 : vector<8x1xf32>
    %c0_13 = arith.constant 0 : index
    %c0_14 = arith.constant 0 : index
    %26 = vector.load %arg6[%c0_13, %c0_14] : memref<8x1xf32, #tpu.memory_space<vmem>>, vector<8x1xf32>
    tpu.vector_store %arg6[%c0_13, %c0_14], %25 {strides = array<i32>} : memref<8x1xf32, #tpu.memory_space<vmem>>, vector<8x1xf32>,
    %c0_15 = arith.constant 0 : index
    %c0_16 = arith.constant 0 : index
    %27 = vector.load %arg7[%c0_15, %c0_16] : memref<8x1xf32, #tpu.memory_space<vmem>>, vector<8x1xf32>
    %cst_17 = arith.constant dense<0.000000e+00> : vector<8xf32>
    %28 = vector.multi_reduction <add>, %5, %cst_17 [1] : vector<8x128xf32> to vector<8xf32>
    %29 = vector.shape_cast %28 : vector<8xf32> to vector<8x1xf32>
    %30 = arith.addf %27, %29 : vector<8x1xf32>
    %c0_18 = arith.constant 0 : index
    %c0_19 = arith.constant 0 : index
    %31 = vector.load %arg7[%c0_18, %c0_19] : memref<8x1xf32, #tpu.memory_space<vmem>>, vector<8x1xf32>
    tpu.vector_store %arg7[%c0_18, %c0_19], %30 {strides = array<i32>} : memref<8x1xf32, #tpu.memory_space<vmem>>, vector<8x1xf32>,
    %c0_20 = arith.constant 0 : index
    %c0_21 = arith.constant 0 : index
    %32 = vector.load %arg8[%c0_20, %c0_21] : memref<8x1xf32, #tpu.memory_space<vmem>>, vector<8x1xf32>
    %cst_22 = arith.constant 1.000000e+00 : f32
    %33 = vector.broadcast %cst_22 : f32 to vector<8x128xf32>
    %34 = arith.subf %33, %13 : vector<8x128xf32>
    %35 = arith.mulf %34, %6 : vector<8x128xf32>
    %cst_23 = arith.constant dense<0.000000e+00> : vector<8xf32>
    %36 = vector.multi_reduction <add>, %35, %cst_23 [1] : vector<8x128xf32> to vector<8xf32>
    %37 = vector.shape_cast %36 : vector<8xf32> to vector<8x1xf32>
    %38 = arith.addf %32, %37 : vector<8x1xf32>
    %c0_24 = arith.constant 0 : index
    %c0_25 = arith.constant 0 : index
    %39 = vector.load %arg8[%c0_24, %c0_25] : memref<8x1xf32, #tpu.memory_space<vmem>>, vector<8x1xf32>
    tpu.vector_store %arg8[%c0_24, %c0_25], %38 {strides = array<i32>} : memref<8x1xf32, #tpu.memory_space<vmem>>, vector<8x1xf32>,
    %c0_26 = arith.constant 0 : index
    %c0_27 = arith.constant 0 : index
    %40 = vector.load %arg9[%c0_26, %c0_27] : memref<8x1xf32, #tpu.memory_space<vmem>>, vector<8x1xf32>
    %cst_28 = arith.constant 1.000000e+00 : f32
    %41 = vector.broadcast %cst_28 : f32 to vector<8x128xf32>
    %42 = arith.subf %41, %21 : vector<8x128xf32>
    %43 = arith.mulf %42, %7 : vector<8x128xf32>
    %cst_29 = arith.constant dense<0.000000e+00> : vector<8xf32>
    %44 = vector.multi_reduction <add>, %43, %cst_29 [1] : vector<8x128xf32> to vector<8xf32>
    %45 = vector.shape_cast %44 : vector<8xf32> to vector<8x1xf32>
    %46 = arith.addf %40, %45 : vector<8x1xf32>
    %c0_30 = arith.constant 0 : index
    %c0_31 = arith.constant 0 : index
    %47 = vector.load %arg9[%c0_30, %c0_31] : memref<8x1xf32, #tpu.memory_space<vmem>>, vector<8x1xf32>
    tpu.vector_store %arg9[%c0_30, %c0_31], %46 {strides = array<i32>} : memref<8x1xf32, #tpu.memory_space<vmem>>, vector<8x1xf32>,
    %c0_i32_32 = arith.constant 0 : i32
    %48 = arith.cmpi eq, %arg1, %c0_i32_32 : i32
    %49 = arith.extui %48 : i1 to i32
    %cst_33 = arith.constant 1.000000e-07 : f32
    %c0_i32_34 = arith.constant 0 : i32
    %50 = arith.cmpi ne, %49, %c0_i32_34 : i32
    scf.if %50 {
      %c0_35 = arith.constant 0 : index
      %c0_36 = arith.constant 0 : index
      %51 = vector.load %arg6[%c0_35, %c0_36] : memref<8x1xf32, #tpu.memory_space<vmem>>, vector<8x1xf32>
      %52 = vector.broadcast %cst_33 : f32 to vector<8x1xf32>
      %53 = arith.addf %51, %52 : vector<8x1xf32>
      %c0_37 = arith.constant 0 : index
      %c0_38 = arith.constant 0 : index
      %54 = vector.load %arg7[%c0_37, %c0_38] : memref<8x1xf32, #tpu.memory_space<vmem>>, vector<8x1xf32>
      %c0_39 = arith.constant 0 : index
      %c0_40 = arith.constant 0 : index
      %55 = vector.load %arg6[%c0_39, %c0_40] : memref<8x1xf32, #tpu.memory_space<vmem>>, vector<8x1xf32>
      %56 = arith.subf %54, %55 : vector<8x1xf32>
      %57 = vector.broadcast %cst_33 : f32 to vector<8x1xf32>
      %58 = arith.addf %56, %57 : vector<8x1xf32>
      %c0_41 = arith.constant 0 : index
      %c0_42 = arith.constant 0 : index
      %59 = vector.load %arg8[%c0_41, %c0_42] : memref<8x1xf32, #tpu.memory_space<vmem>>, vector<8x1xf32>
      %60 = arith.divf %59, %53 : vector<8x1xf32>
      %c0_43 = arith.constant 0 : index
      %c0_44 = arith.constant 0 : index
      %61 = vector.load %arg9[%c0_43, %c0_44] : memref<8x1xf32, #tpu.memory_space<vmem>>, vector<8x1xf32>
      %62 = arith.divf %61, %58 : vector<8x1xf32>
      %63 = arith.addf %60, %62 : vector<8x1xf32>
      %cst_45 = arith.constant 1.42857146 : f32
      %64 = vector.broadcast %cst_45 : f32 to vector<8x1xf32>
      %65 = arith.mulf %64, %63 : vector<8x1xf32>
      %c0_46 = arith.constant 0 : index
      %c0_47 = arith.constant 0 : index
      %66 = vector.load %arg5[%c0_46, %c0_47] : memref<8x1xf32, #tpu.memory_space<vmem>>, vector<8x1xf32>
      tpu.vector_store %arg5[%c0_46, %c0_47], %65 {strides = array<i32>} : memref<8x1xf32, #tpu.memory_space<vmem>>, vector<8x1xf32>,
    } else {
    }
    return
  }
  func.func @transform_0(%arg0: i32, %arg1: i32) -> (i32, i32) {
    %c0_i32 = arith.constant 0 : i32
    return %arg0, %arg1 : i32, i32
  }
  func.func @transform_1(%arg0: i32, %arg1: i32) -> (i32, i32) {
    %c0_i32 = arith.constant 0 : i32
    return %arg0, %arg1 : i32, i32
  }
  func.func @transform_2(%arg0: i32, %arg1: i32) -> (i32, i32) {
    %c0_i32 = arith.constant 0 : i32
    return %arg0, %arg1 : i32, i32
  }
  func.func @transform_3(%arg0: i32, %arg1: i32) -> (i32, i32) {
    %c0_i32 = arith.constant 0 : i32
    %c0_i32_0 = arith.constant 0 : i32
    return %arg0, %c0_i32 : i32, i32
  }
}

</mosaic_0001>

<llo_original>
// kernel: tpu_custom_call.1
$region0: #{tpu_custom_call.1}
  #allocation0 [shape = 'u32[]', space=smem, size = 0x4, offset = 0x4, fixed_abs, tag = 'smem constant byte address 0x4 - core index']
  #allocation1 [shape = 'u32[144,128]{1,0:T(1,128)}', space=vmem, size = 0x12000, scoped, tag = 'internal scratch']
  #allocation2 [shape = 'f32[8,1]{1,0:T(8,128)}', space=vmem, size = 0x1000, scoped, tag = 'scratch operand']
  #allocation3 [shape = 'f32[8,1]{1,0:T(8,128)}', space=vmem, size = 0x1000, scoped, tag = 'scratch operand']
  #allocation4 [shape = 'f32[8,1]{1,0:T(8,128)}', space=vmem, size = 0x1000, scoped, tag = 'scratch operand']
  #allocation5 [shape = 'f32[8,1]{1,0:T(8,128)}', space=vmem, size = 0x1000, scoped, tag = 'scratch operand']
  %s0 = inlined_call_operand.hbm [shape: f32[8,128], index: 0, kind: input, shape index: {}]
  %s1 = inlined_call_operand.hbm [shape: f32[8,128], index: 1, kind: input, shape index: {}]
  %s2 = inlined_call_operand.hbm [shape: f32[8,128], index: 2, kind: input, shape index: {}]
  %s3 = inlined_call_operand.vmem [shape: f32[8,1], index: 3, kind: output, shape index: {}]
  %s4 = sld [smem:[#allocation0]]
  $region42: #{tpu_custom_call.1} parent=0
    _
  %s6 = ssub.s32 1, %s4
  %s7 = scalar_select 0, %s6, %s4
  $region1: #{tpu_custom_call.1} parent=0
    #allocation6 [shape = 'u8[4096]{0}', space=vmem, size = 0x1000, scoped, tag = 'input window, operand 0, single buffered']
    #allocation7 [shape = 's32[1]{0}', space=sflag, size = 0x4, scoped, tag = 'scoped memory for tpu_custom_call.1']
    #allocation8 [shape = 'u8[4096]{0}', space=vmem, size = 0x1000, scoped, tag = 'input window, operand 1, single buffered']
    #allocation9 [shape = 's32[1]{0}', space=sflag, size = 0x4, scoped, tag = 'scoped memory for tpu_custom_call.1']
    #allocation10 [shape = 'u8[4096]{0}', space=vmem, size = 0x1000, scoped, tag = 'input window, operand 2, single buffered']
    %8 = vsyncpa [#allocation7], 0
    %9 = vsyncpa [#allocation9], 0
    // Predicated region
    $region2: #{tpu_custom_call.1} parent=1 // pred_check
      _
    $region3: #{tpu_custom_call.1} parent=1 // pred_check_branch
      %11 = sbr.rel (0) target = $region5
    $region4: #{tpu_custom_call.1} parent=1 // pred_region
      %s13 = ssub.s32 128, 128
      %14 = vsyncadd [#allocation7], %s13
      %s16 = sshll.u32 [#allocation6], 4
      %s17 = int_to_ptr.vmem [resolvable:$true] %s16
      %19 = dma.hbm_to_vmem [thread:$0]  %s0, 128, %s17, [#allocation7]
    $region5: #{tpu_custom_call.1} parent=1 // pred_fallthru
      _
    // Predicated region
    $region6: #{tpu_custom_call.1} parent=1 // pred_check
      _
    $region7: #{tpu_custom_call.1} parent=1 // pred_check_branch
      %21 = sbr.rel (0) target = $region9
    $region8: #{tpu_custom_call.1} parent=1 // pred_region
      %s23 = ssub.s32 128, 128
      %24 = vsyncadd [#allocation9], %s23
      %s26 = sshll.u32 [#allocation8], 4
      %s27 = int_to_ptr.vmem [resolvable:$true] %s26
      %29 = dma.hbm_to_vmem [thread:$0]  %s1, 128, %s27, [#allocation9]
    $region9: #{tpu_custom_call.1} parent=1 // pred_fallthru
      _
    // Predicated region
    $region10: #{tpu_custom_call.1} parent=1 // pred_check
      _
    $region11: #{tpu_custom_call.1} parent=1 // pred_check_branch
      %31 = sbr.rel (0) target = $region13
    $region12: #{tpu_custom_call.1} parent=1 // pred_region
      %s33 = ssub.s32 128, 128
      %34 = vsyncadd [#allocation9], %s33
      %s36 = sshll.u32 [#allocation10], 4
      %s37 = int_to_ptr.vmem [resolvable:$true] %s36
      %39 = dma.hbm_to_vmem [thread:$0]  %s2, 128, %s37, [#allocation9]
    $region13: #{tpu_custom_call.1} parent=1 // pred_fallthru
      _
    // Predicated region
    $region14: #{tpu_custom_call.1} parent=1 // pred_check
      _
    $region15: #{tpu_custom_call.1} parent=1 // pred_check_branch
      %41 = sbr.rel (0) target = $region17
    $region16: #{tpu_custom_call.1} parent=1 // pred_region
      %42 = dma.done [#allocation7], 128
    $region17: #{tpu_custom_call.1} parent=1 // pred_fallthru
      _
    // Predicated region
    $region18: #{tpu_custom_call.1} parent=1 // pred_check
      _
    $region19: #{tpu_custom_call.1} parent=1 // pred_check_branch
      %44 = sbr.rel (0) target = $region21
    $region20: #{tpu_custom_call.1} parent=1 // pred_region
      %45 = dma.done [#allocation9], 128
    $region21: #{tpu_custom_call.1} parent=1 // pred_fallthru
      _
    // Predicated region
    $region22: #{tpu_custom_call.1} parent=1 // pred_check
      _
    $region23: #{tpu_custom_call.1} parent=1 // pred_check_branch
      %47 = sbr.rel (0) target = $region25
    $region24: #{tpu_custom_call.1} parent=1 // pred_region
      %48 = dma.done [#allocation9], 128
    $region25: #{tpu_custom_call.1} parent=1 // pred_fallthru
      _
    %p49 = scmp.eq.s32.totalorder 0, 0
    // Predicated region
    $region26: #{tpu_custom_call.1} parent=1 // pred_check
      %p50 = pneg %p49
    $region27: #{tpu_custom_call.1} parent=1 // pred_check_branch
      %52 = sbr.rel (%p50) target = $region29
    $region28: #{tpu_custom_call.1} parent=1 // pred_region
      %vm53 = vcmask 7168
      %54 = vst.msk [vmem:[#allocation2] sm:$0xff] %vm53, 0.0
      %55 = vst.msk [vmem:[#allocation3] sm:$0xff] %vm53, 0.0
      %56 = vst.msk [vmem:[#allocation4] sm:$0xff] %vm53, 0.0
      %57 = vst.msk [vmem:[#allocation5] sm:$0xff] %vm53, 0.0
    $region29: #{tpu_custom_call.1} parent=1 // pred_fallthru
      _
    %v58 = vld [vmem:[#allocation6] sm:$0xff]
    %v59 = vld [vmem:[#allocation8] sm:$0xff]
    %v60 = vld [vmem:[#allocation10] sm:$0xff]
    %v61 = vmul.f32 %v59, %v60
    %v62 = vsub.f32 %v60, %v61
    %v63 = vadd.f32 %v58, 1e-07
    %v64 = vlog2.pop %v63
    %v65 = vmul.f32 %v64, 0.6931472
    %v66 = vmul.f32 %v65, 0.7
    %v67 = vmul.f32 %v66, 1.442695
    %v68 = vpow.pop %v67
    %v69 = vsub.f32 1.0, %v58
    %v70 = vadd.f32 %v69, 1e-07
    %v71 = vlog2.pop %v70
    %v72 = vmul.f32 %v71, 0.6931472
    %v73 = vmul.f32 %v72, 0.7
    %v74 = vmul.f32 %v73, 1.442695
    %v75 = vpow.pop %v74
    %v76 = vld [vmem:[#allocation2] sm:$0xff]
    %77 = vadd.xlane.f32.xlu0 %v61
    %v78 = vpop.xlane.xlu0 %77
    %v79 = vadd.f32 %v76, %v78
    %vm80 = vcmask 7168
    %81 = vst.msk [vmem:[#allocation2] sm:$0xff] %vm80, %v79
    %v82 = vld [vmem:[#allocation3] sm:$0xff]
    %83 = vadd.xlane.f32.xlu0 %v60
    %v84 = vpop.xlane.xlu0 %83
    %v85 = vadd.f32 %v82, %v84
    %86 = vst.msk [vmem:[#allocation3] sm:$0xff] %vm80, %v85
    %v87 = vld [vmem:[#allocation4] sm:$0xff]
    %v88 = vsub.f32 1.0, %v68
    %v89 = vmul.f32 %v88, %v61
    %90 = vadd.xlane.f32.xlu0 %v89
    %v91 = vpop.xlane.xlu0 %90
    %v92 = vadd.f32 %v87, %v91
    %93 = vst.msk [vmem:[#allocation4] sm:$0xff] %vm80, %v92
    %v94 = vld [vmem:[#allocation5] sm:$0xff]
    %v95 = vsub.f32 1.0, %v75
    %v96 = vmul.f32 %v95, %v62
    %97 = vadd.xlane.f32.xlu0 %v96
    %v98 = vpop.xlane.xlu0 %97
    %v99 = vadd.f32 %v94, %v98
    %100 = vst.msk [vmem:[#allocation5] sm:$0xff] %vm80, %v99
    // Predicated region
    $region30: #{tpu_custom_call.1} parent=1 // pred_check
      %p101 = pneg %p49
    $region31: #{tpu_custom_call.1} parent=1 // pred_check_branch
      %103 = sbr.rel (%p101) target = $region33
    $region32: #{tpu_custom_call.1} parent=1 // pred_region
      %v104 = vld [vmem:[#allocation2] sm:$0xff]
      %v105 = vadd.f32 %v104, 1e-07
      %v106 = vld [vmem:[#allocation3] sm:$0xff]
      %v107 = vsub.f32 %v106, %v104
      %v108 = vadd.f32 %v107, 1e-07
      %v109 = vld [vmem:[#allocation4] sm:$0xff]
      %v110 = vrcp.pop %v105
      %v111 = vmul.f32 %v109, %v110
      %v112 = vld [vmem:[#allocation5] sm:$0xff]
      %v113 = vrcp.pop %v108
      %v114 = vmul.f32 %v112, %v113
      %v115 = vadd.f32 %v111, %v114
      %v116 = vmul.f32 %v115, 1.4285715
      %117 = vst.msk [vmem:[%s3] sm:$0xff] %vm80, %v116
    $region33: #{tpu_custom_call.1} parent=1 // pred_fallthru
      _
    // Predicated region
    $region34: #{tpu_custom_call.1} parent=1 // pred_check
      _
    $region35: #{tpu_custom_call.1} parent=1 // pred_check_branch
      %119 = sbr.rel (0) target = $region37
    $region36: #{tpu_custom_call.1} parent=1 // pred_region
      _
    $region37: #{tpu_custom_call.1} parent=1 // pred_fallthru
      _
    // Predicated region
    $region38: #{tpu_custom_call.1} parent=1 // pred_check
      _
    $region39: #{tpu_custom_call.1} parent=1 // pred_check_branch
      %121 = sbr.rel (0) target = $region41
    $region40: #{tpu_custom_call.1} parent=1 // pred_region
      _
    $region41: #{tpu_custom_call.1} parent=1 // pred_fallthru
      _
    %122 = vsyncpa [#allocation7], 1
    %123 = vsyncpa [#allocation9], 1

</llo_original>
